<compile_context>
chip_gen: v5e
topology: v5e:2x2
jax: 0.10.0
libtpu: 0.0.40
codegen_flags: <defaults>
</compile_context>

<pallas_src>
import jax
import jax.numpy as jnp
import numpy as np
from jax.experimental import pallas as pl
from jax.experimental.pallas import tpu as pltpu

_LANES = 128  # vreg lane width


def _ytmt_add_neg_kernel(xl_ref, xr_ref, ol_ref, or_ref):
    xl = xl_ref[...]                       # (row_tile, 128)
    xr = xr_ref[...]
    pos_l = jnp.maximum(xl, 0.0)           # relu(x_l)
    pos_r = jnp.maximum(xr, 0.0)           # relu(x_r)
    # x - relu(x) == min(x, 0): one VPU op, no subtract.
    neg_l = jnp.minimum(xl, 0.0)
    neg_r = jnp.minimum(xr, 0.0)
    ol_ref[...] = pos_l + neg_r
    or_ref[...] = pos_r + neg_l


def _dim_semantics():
    """CORE_PARALLEL on v7x (2 TCs/chip); plain 'parallel' elsewhere."""
    try:
        kind = jax.devices()[0].device_kind.lower()
    except Exception:
        kind = ""
    core_parallel = getattr(pltpu, "CORE_PARALLEL", None)
    if core_parallel is not None and ("v7" in kind or "tpu7" in kind):
        return (core_parallel,)
    return ("parallel",)


def ytmt_block_add_negative(x_l, x_r, *, max_rows_per_block=4096,
                            min_pallas_elements=65536):
    """x_l, x_r: same shape/dtype (float). Returns (out_l, out_r)."""
    assert x_l.shape == x_r.shape and x_l.dtype == x_r.dtype
    dtype = x_l.dtype
    assert jnp.issubdtype(dtype, jnp.floating), "float activations expected"
    orig_shape = x_l.shape
    total = int(np.prod(orig_shape))

    # Tiny inputs: pallas_call fixed cost dominates; let XLA fuse one pass.
    if total < min_pallas_elements:
        out_l = jnp.maximum(x_l, 0.0) + jnp.minimum(x_r, 0.0)
        out_r = jnp.maximum(x_r, 0.0) + jnp.minimum(x_l, 0.0)
        return out_l, out_r

    itemsize = np.dtype(dtype).itemsize
    sublanes = 32 // itemsize          # 8 for f32, 16 for bf16/f16

    # Contiguous flatten (no transpose) -> lane-dense (rows, 128) slab.
    flat_l = x_l.reshape(-1)
    flat_r = x_r.reshape(-1)
    needs_pad = (total % _LANES) != 0
    if needs_pad:
        # Rare fallback: only <=127 pad elems; zero-pad is exact for this op
        # (relu(0) + min(0,0) == 0), but it does cost one extra HBM pass —
        # common NCHW activation shapes never hit it.
        pad = _LANES - (total % _LANES)
        flat_l = jnp.pad(flat_l, (0, pad))
        flat_r = jnp.pad(flat_r, (0, pad))
    rows = (total + _LANES - 1) // _LANES

    xl2 = flat_l.reshape(rows, _LANES)
    xr2 = flat_r.reshape(rows, _LANES)

    # Row tile: a multiple of the sublane depth, capped by max_rows_per_block.
    # If the whole array fits in one block, use the full extent (always legal).
    max_rows = max(sublanes, (max_rows_per_block // sublanes) * sublanes)
    row_tile = rows if rows <= max_rows else max_rows
    grid = (pl.cdiv(rows, row_tile),)  # Pallas masks the partial last block.
    spec = pl.BlockSpec((row_tile, _LANES), lambda i: (i, 0))

    out_l2, out_r2 = pl.pallas_call(
        _ytmt_add_neg_kernel,
        out_shape=(
            jax.ShapeDtypeStruct((rows, _LANES), dtype),
            jax.ShapeDtypeStruct((rows, _LANES), dtype),
        ),
        grid=grid,
        in_specs=[spec, spec],
        out_specs=(spec, spec),
        compiler_params=pltpu.CompilerParams(
            dimension_semantics=_dim_semantics(),
            # 4 arrays x 2 buffers x 2 MiB (f32, 4096 rows) = 16 MiB, which
            # exceeds v5e's 16 MiB scoped default; raise explicitly while
            # staying well under v7x's 64 MiB physical VMEM.
            vmem_limit_bytes=40 * 1024 * 1024,
        ),
    )(xl2, xr2)

    if needs_pad:
        out_l = out_l2.reshape(-1)[:total].reshape(orig_shape)
        out_r = out_r2.reshape(-1)[:total].reshape(orig_shape)
    else:
        out_l = out_l2.reshape(orig_shape)
        out_r = out_r2.reshape(orig_shape)
    return out_l, out_r


def reference(x_l, x_r):
    """Pure-JAX reference matching the PyTorch module exactly."""
    out_lp = jnp.maximum(x_l, 0.0)
    out_ln = x_l - out_lp
    out_rp = jnp.maximum(x_r, 0.0)
    out_rn = x_r - out_rp
    return out_lp + out_rn, out_rp + out_ln


if __name__ == "__main__":
    key = jax.random.PRNGKey(0)
    k1, k2, k3, k4 = jax.random.split(key, 4)

    # Primary test shape (module spec): NCHW = 2 x 4 x 16 x 16, f32.
    x_l = jax.random.normal(k1, (2, 4, 16, 16), jnp.float32)
    x_r = jax.random.normal(k2, (2, 4, 16, 16), jnp.float32)

    # Force the Pallas path (the tiny-input fast path would bypass it).
    run_pallas = jax.jit(
        lambda a, b: ytmt_block_add_negative(a, b, min_pallas_elements=0))
    out_l, out_r = run_pallas(x_l, x_r)
    jax.block_until_ready((out_l, out_r))
    ref_l, ref_r = reference(x_l, x_r)
    np.testing.assert_allclose(np.asarray(out_l), np.asarray(ref_l),
                               rtol=1e-6, atol=1e-6)
    np.testing.assert_allclose(np.asarray(out_r), np.asarray(ref_r),
                               rtol=1e-6, atol=1e-6)

    # Exercise a multi-block grid with a masked partial last block plus the
    # non-128-divisible pad fallback (total = 5280 elements).
    y_l = jax.random.normal(k3, (2, 4, 33, 20), jnp.float32)
    y_r = jax.random.normal(k4, (2, 4, 33, 20), jnp.float32)
    run_small_blocks = jax.jit(
        lambda a, b: ytmt_block_add_negative(
            a, b, min_pallas_elements=0, max_rows_per_block=16))
    yo_l, yo_r = run_small_blocks(y_l, y_r)
    jax.block_until_ready((yo_l, yo_r))
    yr_l, yr_r = reference(y_l, y_r)
    np.testing.assert_allclose(np.asarray(yo_l), np.asarray(yr_l),
                               rtol=1e-6, atol=1e-6)
    np.testing.assert_allclose(np.asarray(yo_r), np.asarray(yr_r),
                               rtol=1e-6, atol=1e-6)

    # bf16 path (halves HBM bytes for this purely bandwidth-bound op).
    b_l = x_l.astype(jnp.bfloat16)
    b_r = x_r.astype(jnp.bfloat16)
    bo_l, bo_r = run_pallas(b_l, b_r)
    jax.block_until_ready((bo_l, bo_r))
    br_l, br_r = reference(b_l, b_r)
    np.testing.assert_allclose(np.asarray(bo_l, dtype=np.float32),
                               np.asarray(br_l, dtype=np.float32),
                               rtol=1e-2, atol=1e-2)
    np.testing.assert_allclose(np.asarray(bo_r, dtype=np.float32),
                               np.asarray(br_r, dtype=np.float32),
                               rtol=1e-2, atol=1e-2)

    print("KERNEL_OK")
</pallas_src>

<mosaic_0001>
module attributes {stable_mosaic.version = 11 : i64} {
  func.func @_ytmt_add_neg_kernel(%arg0: i32, %arg1: memref<16x128xf32, #tpu.memory_space<vmem>>, %arg2: memref<16x128xf32, #tpu.memory_space<vmem>>, %arg3: memref<16x128xf32, #tpu.memory_space<vmem>>, %arg4: memref<16x128xf32, #tpu.memory_space<vmem>>) attributes {dimension_semantics = [#tpu.dimension_semantics<parallel>], iteration_bounds = array<i64: 1>, scalar_prefetch = 0 : i64, scratch_operands = 0 : i64, tpu.core_type = #tpu.core_type<tc>, window_params = [{transform_indices = @transform_0, window_bounds = array<i64: 16, 128>}, {transform_indices = @transform_1, window_bounds = array<i64: 16, 128>}, {transform_indices = @transform_2, window_bounds = array<i64: 16, 128>}, {transform_indices = @transform_3, window_bounds = array<i64: 16, 128>}]} {
    %c0 = arith.constant 0 : index
    %c0_0 = arith.constant 0 : index
    %0 = vector.load %arg1[%c0, %c0_0] : memref<16x128xf32, #tpu.memory_space<vmem>>, vector<16x128xf32>
    %c0_1 = arith.constant 0 : index
    %c0_2 = arith.constant 0 : index
    %1 = vector.load %arg2[%c0_1, %c0_2] : memref<16x128xf32, #tpu.memory_space<vmem>>, vector<16x128xf32>
    %cst = arith.constant 0.000000e+00 : f32
    %2 = vector.broadcast %cst : f32 to vector<16x128xf32>
    %3 = arith.maximumf %0, %2 : vector<16x128xf32>
    %cst_3 = arith.constant 0.000000e+00 : f32
    %4 = vector.broadcast %cst_3 : f32 to vector<16x128xf32>
    %5 = arith.maximumf %1, %4 : vector<16x128xf32>
    %cst_4 = arith.constant 0.000000e+00 : f32
    %6 = vector.broadcast %cst_4 : f32 to vector<16x128xf32>
    %7 = arith.minimumf %0, %6 : vector<16x128xf32>
    %cst_5 = arith.constant 0.000000e+00 : f32
    %8 = vector.broadcast %cst_5 : f32 to vector<16x128xf32>
    %9 = arith.minimumf %1, %8 : vector<16x128xf32>
    %10 = arith.addf %3, %9 : vector<16x128xf32>
    %c0_6 = arith.constant 0 : index
    %c0_7 = arith.constant 0 : index
    %11 = vector.load %arg3[%c0_6, %c0_7] : memref<16x128xf32, #tpu.memory_space<vmem>>, vector<16x128xf32>
    tpu.vector_store %arg3[%c0_6, %c0_7], %10 {strides = array<i32>} : memref<16x128xf32, #tpu.memory_space<vmem>>, vector<16x128xf32>,
    %12 = arith.addf %5, %7 : vector<16x128xf32>
    %c0_8 = arith.constant 0 : index
    %c0_9 = arith.constant 0 : index
    %13 = vector.load %arg4[%c0_8, %c0_9] : memref<16x128xf32, #tpu.memory_space<vmem>>, vector<16x128xf32>
    tpu.vector_store %arg4[%c0_8, %c0_9], %12 {strides = array<i32>} : memref<16x128xf32, #tpu.memory_space<vmem>>, vector<16x128xf32>,
    return
  }
  func.func @transform_0(%arg0: i32) -> (i32, i32) {
    %c0_i32 = arith.constant 0 : i32
    %c0_i32_0 = arith.constant 0 : i32
    return %arg0, %c0_i32 : i32, i32
  }
  func.func @transform_1(%arg0: i32) -> (i32, i32) {
    %c0_i32 = arith.constant 0 : i32
    %c0_i32_0 = arith.constant 0 : i32
    return %arg0, %c0_i32 : i32, i32
  }
  func.func @transform_2(%arg0: i32) -> (i32, i32) {
    %c0_i32 = arith.constant 0 : i32
    %c0_i32_0 = arith.constant 0 : i32
    return %arg0, %c0_i32 : i32, i32
  }
  func.func @transform_3(%arg0: i32) -> (i32, i32) {
    %c0_i32 = arith.constant 0 : i32
    %c0_i32_0 = arith.constant 0 : i32
    return %arg0, %c0_i32 : i32, i32
  }
}

</mosaic_0001>

<llo_original>
// kernel: _lambda_.1
$region0: #{_lambda_.1}
  #allocation0 [shape = 'u32[]', space=smem, size = 0x4, offset = 0x4, fixed_abs, tag = 'smem constant byte address 0x4 - core index']
  #allocation1 [shape = 'u32[72,128]{1,0:T(1,128)}', space=vmem, size = 0x9000, scoped, tag = 'internal scratch']
  %s0 = inlined_call_operand.vmem [shape: f32[16,128], index: 0, kind: input, shape index: {}]
  %s1 = inlined_call_operand.vmem [shape: f32[16,128], index: 1, kind: input, shape index: {}]
  %s2 = inlined_call_operand.vmem [shape: f32[16,128], index: 2, kind: output, shape index: {0}]
  %s3 = inlined_call_operand.vmem [shape: f32[16,128], index: 3, kind: output, shape index: {1}]
  %4 = xla_tuple %s2, %s3
  %s5 = sld [smem:[#allocation0]]
  $region26: #{_lambda_.1} parent=0
    _
  %s7 = ssub.s32 1, %s5
  %s8 = scalar_select 0, %s7, %s5
  // Predicated region
  $region2: #{_lambda_.1} parent=0 // pred_check
    _
  $region3: #{_lambda_.1} parent=0 // pred_check_branch
    %10 = sbr.rel (0) target = $region5
  $region4: #{_lambda_.1} parent=0 // pred_region
    _
  $region5: #{_lambda_.1} parent=0 // pred_fallthru
    _
  // Predicated region
  $region6: #{_lambda_.1} parent=0 // pred_check
    _
  $region7: #{_lambda_.1} parent=0 // pred_check_branch
    %12 = sbr.rel (0) target = $region9
  $region8: #{_lambda_.1} parent=0 // pred_region
    _
  $region9: #{_lambda_.1} parent=0 // pred_fallthru
    _
  %v13 = vld [vmem:[%s0] sm:$0xff]
  %v14 = vld [vmem:[%s0 + $0x8] sm:$0xff]
  %v15 = vld [vmem:[%s1] sm:$0xff]
  %v16 = vld [vmem:[%s1 + $0x8] sm:$0xff]
  %v17 = vmax.f32 %v13, 0.0
  %v18 = vmax.f32 %v14, 0.0
  %v19 = vmax.f32 %v15, 0.0
  %v20 = vmax.f32 %v16, 0.0
  %v21 = vmin.f32 %v13, 0.0
  %v22 = vmin.f32 %v14, 0.0
  %v23 = vmin.f32 %v15, 0.0
  %v24 = vmin.f32 %v16, 0.0
  %v25 = vadd.f32 %v17, %v23
  %v26 = vadd.f32 %v18, %v24
  %27 = vst [vmem:[%s2] sm:$0xff] %v25
  %28 = vst [vmem:[%s2 + $0x8] sm:$0xff] %v26
  %v29 = vadd.f32 %v19, %v21
  %v30 = vadd.f32 %v20, %v22
  %31 = vst [vmem:[%s3] sm:$0xff] %v29
  %32 = vst [vmem:[%s3 + $0x8] sm:$0xff] %v30
  // Predicated region
  $region10: #{_lambda_.1} parent=0 // pred_check
    _
  $region11: #{_lambda_.1} parent=0 // pred_check_branch
    %34 = sbr.rel (0) target = $region13
  $region12: #{_lambda_.1} parent=0 // pred_region
    _
  $region13: #{_lambda_.1} parent=0 // pred_fallthru
    _
  // Predicated region
  $region14: #{_lambda_.1} parent=0 // pred_check
    _
  $region15: #{_lambda_.1} parent=0 // pred_check_branch
    %36 = sbr.rel (0) target = $region17
  $region16: #{_lambda_.1} parent=0 // pred_region
    _
  $region17: #{_lambda_.1} parent=0 // pred_fallthru
    _
  // Predicated region
  $region18: #{_lambda_.1} parent=0 // pred_check
    _
  $region19: #{_lambda_.1} parent=0 // pred_check_branch
    %38 = sbr.rel (0) target = $region21
  $region20: #{_lambda_.1} parent=0 // pred_region
    _
  $region21: #{_lambda_.1} parent=0 // pred_fallthru
    _
  // Predicated region
  $region22: #{_lambda_.1} parent=0 // pred_check
    _
  $region23: #{_lambda_.1} parent=0 // pred_check_branch
    %40 = sbr.rel (0) target = $region25
  $region24: #{_lambda_.1} parent=0 // pred_region
    _
  $region25: #{_lambda_.1} parent=0 // pred_fallthru
    _

</llo_original>
